<compile_context>
chip_gen: v5e
topology: v5e:2x2
jax: 0.10.0
libtpu: 0.0.40
codegen_flags: <defaults>
</compile_context>

<pallas_src>
import functools

import jax
import jax.numpy as jnp
from jax.experimental import pallas as pl
from jax.experimental.pallas import tpu as pltpu

_LANE = 128
# 1024 sublanes * 128 lanes = 131072 boxes per grid step; 12 f32 fields
# -> 6 MiB/step of input blocks, 12 MiB double-buffered (fits every
# generation's scoped-VMEM comfortably) while amortizing per-step overhead.
_MAX_TILE_SUBLANES = 1024

# Identity padding: padded boxes decode to exactly (0,0,1,1) and their target
# is the same unit box -> giou == 1.0 exactly -> (1 - giou) == 0, no mask.
_LOC_P_PAD = (0.0, 0.0, 0.0, 0.0)    # zero offsets
_LOC_T_PAD = (0.0, 0.0, 1.0, 1.0)    # unit corner box
_PRIOR_PAD = (0.5, 0.5, 1.0, 1.0)    # prior (cx,cy,w,h) that decodes to (0,0,1,1)


def _round_up(x, m):
    return ((x + m - 1) // m) * m


def _num_tensorcores():
    """TensorCores the 'parallel' grid axis can shard across (safe fallback 1)."""
    try:
        info = pltpu.get_tpu_info()
        for attr in ("num_cores", "num_tensorcores", "tensorcore_count",
                     "num_cores_per_chip", "core_count"):
            v = getattr(info, attr, None)
            if isinstance(v, int) and v > 0:
                return v
    except Exception:
        pass
    try:
        v = getattr(jax.devices()[0], "num_cores", None)
        if isinstance(v, int) and v > 0:
            return v
    except Exception:
        pass
    return 1


# ----------------------------------------------------------------------------
# Kernel
# ----------------------------------------------------------------------------
def _giou_loss_kernel(loc_ref, prior_ref, out_ref, *, var0, var1):
    """One grid step over a (tile_sublanes, 128) slab of boxes.

    loc_ref  : (8, T, 128) f32  fields 0-3 loc_p (dcx,dcy,dw,dh),
                                fields 4-7 loc_t (x1,y1,x2,y2)
    prior_ref: (4, T, 128) f32  prior (cx,cy,w,h)  (packed once, cacheable)
    out_ref  : (8, 128)    f32  partial-sum accumulator, resident across the
                                inner 'arbitrary' grid axis.
    """
    inner = pl.program_id(1)

    @pl.when(inner == 0)
    def _init():
        out_ref[...] = jnp.zeros_like(out_ref)

    dcx, dcy, dw, dh = loc_ref[0], loc_ref[1], loc_ref[2], loc_ref[3]
    tx1, ty1, tx2, ty2 = loc_ref[4], loc_ref[5], loc_ref[6], loc_ref[7]
    pcx, pcy, pw, ph = prior_ref[0], prior_ref[1], prior_ref[2], prior_ref[3]

    # ---- decode ('Center' mode), same op order as the reference ----
    cx = pcx + dcx * var0 * pw
    cy = pcy + dcy * var0 * ph
    w = pw * jnp.exp(dw * var1)
    h = ph * jnp.exp(dh * var1)
    px1 = cx - 0.5 * w
    py1 = cy - 0.5 * h
    px2 = px1 + w
    py2 = py1 + h

    # ---- element-wise GIoU vs. target corner boxes ----
    # area_p kept as (px2-px1)*(py2-py1) (not w*h) to match the reference's
    # rounding; the micro-opt is negligible in this mem-bound kernel.
    area_p = (px2 - px1) * (py2 - py1)
    area_t = (tx2 - tx1) * (ty2 - ty1)
    iw = jnp.maximum(jnp.minimum(px2, tx2) - jnp.maximum(px1, tx1), 0.0)
    ih = jnp.maximum(jnp.minimum(py2, ty2) - jnp.maximum(py1, ty1), 0.0)
    ow = jnp.maximum(jnp.maximum(px2, tx2) - jnp.minimum(px1, tx1), 0.0)
    oh = jnp.maximum(jnp.maximum(py2, ty2) - jnp.minimum(py1, ty1), 0.0)
    inter = iw * ih
    outer = ow * oh
    union = area_p + area_t - inter

    # Exact divides: keeps the 1e-5 match; real degenerate boxes keep the
    # reference's NaN semantics; padded identity boxes give giou == 1 exactly.
    giou = inter / union - (outer - union) / outer
    one_minus = 1.0 - jnp.clip(giou, -1.0, 1.0)              # (T, 128)

    # Fold sublanes 8-way (free reshape + VALU adds) into the single-vreg
    # accumulator living in the resident output block.
    t, l = one_minus.shape
    out_ref[...] += jnp.sum(one_minus.reshape(t // 8, 8, l), axis=0)


# ----------------------------------------------------------------------------
# Packing / tiling helpers
# ----------------------------------------------------------------------------
def _tiling(num, max_tile_sublanes):
    assert max_tile_sublanes % 8 == 0 and max_tile_sublanes > 0
    sublanes = -(-num // _LANE)                               # ceil(num / 128)
    tile_sublanes = min(max_tile_sublanes, _round_up(sublanes, 8))
    tiles = -(-sublanes // tile_sublanes)
    ncores = _num_tensorcores()
    num_parallel = ncores if (ncores > 1 and tiles >= ncores) else 1
    tiles = _round_up(tiles, num_parallel)
    inner_tiles = tiles // num_parallel
    n_pad = tiles * tile_sublanes * _LANE
    return tile_sublanes, num_parallel, inner_tiles, n_pad


def padded_num_boxes(num, max_tile_sublanes=_MAX_TILE_SUBLANES):
    """Padded box count the kernel uses; pass to pack_priors() for caching."""
    return _tiling(num, max_tile_sublanes)[3]


def _pad_rows(x, n_pad, pad_row):
    n = x.shape[0]
    x = x.astype(jnp.float32)
    if n_pad == n:
        return x
    fill = jnp.broadcast_to(jnp.asarray(pad_row, jnp.float32), (n_pad - n, 4))
    return jnp.concatenate([x, fill], axis=0)


def pack_loc(loc_p, loc_t, n_pad):
    """Lane-dense (8, n_pad/128, 128) slab of loc_p / loc_t fields.

    Kept as one pad+stack+transpose+reshape so XLA emits a single transpose
    fusion, which allow_input_fusion lets it try to fold into the kernel's
    input stream.  The zero-copy fix is for the upstream head/matcher to emit
    these field-major (4, N) so this becomes a free reshape.
    """
    lp = _pad_rows(loc_p, n_pad, _LOC_P_PAD)
    lt = _pad_rows(loc_t, n_pad, _LOC_T_PAD)
    slab = jnp.transpose(jnp.stack([lp, lt], axis=0), (0, 2, 1))   # (2, 4, n_pad)
    return slab.reshape(8, n_pad // _LANE, _LANE)


def pack_priors(prior_data, n_pad):
    """Lane-dense (4, n_pad/128, 128) prior slab.

    Priors are static across a training run: compute this ONCE outside the
    step function and pass it via giou_loss(prior_packed=...) so its repack
    HBM round-trip is paid a single time.
    """
    pr = _pad_rows(prior_data, n_pad, _PRIOR_PAD)
    return jnp.transpose(pr, (1, 0)).reshape(4, n_pad // _LANE, _LANE)


# ----------------------------------------------------------------------------
# Public wrapper
# ----------------------------------------------------------------------------
def giou_loss(loc_p, loc_t, prior_data, *, pred_mode='Center', size_sum=True,
              variances=(0.1, 0.2), max_tile_sublanes=_MAX_TILE_SUBLANES,
              prior_packed=None):
    """Pallas implementation of GiouLoss.forward.  Returns a scalar float32."""
    # TODO(synk): pred_mode='Corner' (decode == identity) is not wired up; only
    # the module's default 'Center' path is implemented.
    assert pred_mode == 'Center', "Only Center mode implemented in the kernel"
    num = loc_p.shape[0]
    assert loc_p.shape == (num, 4)
    assert loc_t.shape == (num, 4)
    assert prior_data.shape == (num, 4)

    tile_sublanes, num_parallel, inner_tiles, n_pad = _tiling(num, max_tile_sublanes)

    loc_slab = pack_loc(loc_p, loc_t, n_pad)
    if prior_packed is None:
        prior_packed = pack_priors(prior_data, n_pad)
    assert prior_packed.shape == (4, n_pad // _LANE, _LANE)

    kernel = functools.partial(_giou_loss_kernel,
                               var0=float(variances[0]),
                               var1=float(variances[1]))

    # Double-buffered input blocks + generous headroom; well under physical
    # VMEM on every generation at the default / recommended tile sizes.
    block_bytes = (8 + 4) * tile_sublanes * _LANE * 4
    vmem_limit = 2 * block_bytes + (16 << 20)

    partials = pl.pallas_call(
        kernel,
        out_shape=jax.ShapeDtypeStruct((num_parallel * 8, _LANE), jnp.float32),
        grid=(num_parallel, inner_tiles),
        in_specs=[
            pl.BlockSpec((8, tile_sublanes, _LANE),
                         lambda p, i: (0, p * inner_tiles + i, 0)),
            pl.BlockSpec((4, tile_sublanes, _LANE),
                         lambda p, i: (0, p * inner_tiles + i, 0)),
        ],
        out_specs=pl.BlockSpec((8, _LANE), lambda p, i: (p, 0)),
        compiler_params=pltpu.CompilerParams(
            dimension_semantics=("parallel", "arbitrary"),
            vmem_limit_bytes=vmem_limit,
            allow_input_fusion=[True, True],
        ),
    )(loc_slab, prior_packed)

    loss = jnp.sum(partials)
    if not size_sum:
        loss = loss / jnp.float32(num)          # divide by the UNPADDED count
    return 5.0 * loss


# ----------------------------------------------------------------------------
# Pure-JAX reference + test harness
# ----------------------------------------------------------------------------
def _giou_loss_ref(loc_p, loc_t, prior_data, variances=(0.1, 0.2)):
    """Pure-JAX reference mirroring the PyTorch code (for verification)."""
    loc_p = loc_p.astype(jnp.float32)
    loc_t = loc_t.astype(jnp.float32)
    pri = prior_data.astype(jnp.float32)
    cxcy = pri[:, :2] + loc_p[:, :2] * variances[0] * pri[:, 2:]
    wh = pri[:, 2:] * jnp.exp(loc_p[:, 2:] * variances[1])
    bmin = cxcy - wh / 2.0
    bmax = bmin + wh
    area_p = (bmax[:, 0] - bmin[:, 0]) * (bmax[:, 1] - bmin[:, 1])
    area_t = (loc_t[:, 2] - loc_t[:, 0]) * (loc_t[:, 3] - loc_t[:, 1])
    inter = jnp.clip(jnp.minimum(bmax, loc_t[:, 2:]) -
                     jnp.maximum(bmin, loc_t[:, :2]), 0.0, None)
    outer = jnp.clip(jnp.maximum(bmax, loc_t[:, 2:]) -
                     jnp.minimum(bmin, loc_t[:, :2]), 0.0, None)
    inter_a = inter[:, 0] * inter[:, 1]
    outer_a = outer[:, 0] * outer[:, 1]
    union = area_p + area_t - inter_a
    giou = jnp.clip(inter_a / union - (outer_a - union) / outer_a, -1.0, 1.0)
    return 5.0 * jnp.sum(1.0 - giou)


def _make_inputs(key, n):
    k1, k2, k3, k4 = jax.random.split(key, 4)
    # Predicted offsets (dcx, dcy, dw, dh) — small, as a regression head emits.
    loc_p = jax.random.normal(k1, (n, 4), dtype=jnp.float32) * 0.1
    # Priors in (cx, cy, w, h), normalized coordinates.
    prior_cxcy = jax.random.uniform(k2, (n, 2), minval=0.2, maxval=0.8)
    prior_wh = jax.random.uniform(k3, (n, 2), minval=0.05, maxval=0.3)
    prior_data = jnp.concatenate([prior_cxcy, prior_wh], axis=1).astype(jnp.float32)
    # Ground-truth corner boxes (x1, y1, x2, y2): jitter priors so boxes overlap.
    jitter = jax.random.normal(k4, (n, 4), dtype=jnp.float32) * 0.02
    t_min = prior_cxcy - prior_wh / 2.0 + jitter[:, :2]
    t_max = prior_cxcy + prior_wh / 2.0 + jnp.abs(jitter[:, 2:]) + 0.01
    loc_t = jnp.concatenate([t_min, t_max], axis=1).astype(jnp.float32)
    return loc_p, loc_t, prior_data


if __name__ == "__main__":
    key = jax.random.PRNGKey(0)
    k_a, k_b = jax.random.split(key, 2)

    # --- Test 1: small case (single grid step, identity padding exercised) ---
    N1 = 64
    loc_p, loc_t, prior = _make_inputs(k_a, N1)
    out1 = jax.block_until_ready(
        giou_loss(loc_p, loc_t, prior, pred_mode='Center',
                  size_sum=True, variances=(0.1, 0.2)))
    ref1 = jax.block_until_ready(_giou_loss_ref(loc_p, loc_t, prior))
    assert jnp.allclose(out1, ref1, rtol=1e-5, atol=1e-4), (out1, ref1)

    # --- Test 2: multi-step grid (+ possible 2-way TensorCore split), cached
    #     prior slab, size_sum=False.  The tiny tile forces >1 grid step
    #     without needing a large N. ---
    N2 = 3000
    loc_p2, loc_t2, prior2 = _make_inputs(k_b, N2)
    n_pad2 = padded_num_boxes(N2, max_tile_sublanes=8)
    prior_slab2 = pack_priors(prior2, n_pad2)        # compute once, reuse every step
    out2 = jax.block_until_ready(
        giou_loss(loc_p2, loc_t2, prior2, pred_mode='Center',
                  size_sum=False, variances=(0.1, 0.2),
                  max_tile_sublanes=8, prior_packed=prior_slab2))
    ref2 = jax.block_until_ready(_giou_loss_ref(loc_p2, loc_t2, prior2) / N2)
    assert jnp.allclose(out2, ref2, rtol=1e-5, atol=1e-4), (out2, ref2)

    print("KERNEL_OK")
</pallas_src>

<mosaic_0001>
module attributes {stable_mosaic.version = 11 : i64} {
  func.func @_giou_loss_kernel(%arg0: i32, %arg1: i32, %arg2: memref<8x8x128xf32, #tpu.memory_space<vmem>>, %arg3: memref<4x8x128xf32, #tpu.memory_space<vmem>>, %arg4: memref<8x128xf32, #tpu.memory_space<vmem>>) attributes {dimension_semantics = [#tpu.dimension_semantics<parallel>, #tpu.dimension_semantics<arbitrary>], iteration_bounds = array<i64: 1, 1>, scalar_prefetch = 0 : i64, scratch_operands = 0 : i64, tpu.core_type = #tpu.core_type<tc>, window_params = [{transform_indices = @transform_0, window_bounds = array<i64: 8, 8, 128>}, {transform_indices = @transform_1, window_bounds = array<i64: 4, 8, 128>}, {transform_indices = @transform_2, window_bounds = array<i64: 8, 128>}]} {
    %c0_i32 = arith.constant 0 : i32
    %0 = arith.cmpi eq, %arg1, %c0_i32 : i32
    %1 = arith.extui %0 : i1 to i32
    %c0_i32_0 = arith.constant 0 : i32
    %2 = arith.cmpi ne, %1, %c0_i32_0 : i32
    scf.if %2 {
      %cst_46 = arith.constant 0.000000e+00 : f32
      %96 = vector.broadcast %cst_46 : f32 to vector<8x128xf32>
      %c0_47 = arith.constant 0 : index
      %c0_48 = arith.constant 0 : index
      %97 = vector.load %arg4[%c0_47, %c0_48] : memref<8x128xf32, #tpu.memory_space<vmem>>, vector<8x128xf32>
      tpu.vector_store %arg4[%c0_47, %c0_48], %96 {strides = array<i32>} : memref<8x128xf32, #tpu.memory_space<vmem>>, vector<8x128xf32>,
    } else {
    }
    %c0 = arith.constant 0 : index
    %c0_1 = arith.constant 0 : index
    %c0_2 = arith.constant 0 : index
    %3 = vector.load %arg2[%c0, %c0_1, %c0_2] : memref<8x8x128xf32, #tpu.memory_space<vmem>>, vector<1x8x128xf32>
    %4 = vector.shape_cast %3 : vector<1x8x128xf32> to vector<8x128xf32>
    %c1 = arith.constant 1 : index
    %c0_3 = arith.constant 0 : index
    %c0_4 = arith.constant 0 : index
    %5 = vector.load %arg2[%c1, %c0_3, %c0_4] : memref<8x8x128xf32, #tpu.memory_space<vmem>>, vector<1x8x128xf32>
    %6 = vector.shape_cast %5 : vector<1x8x128xf32> to vector<8x128xf32>
    %c2 = arith.constant 2 : index
    %c0_5 = arith.constant 0 : index
    %c0_6 = arith.constant 0 : index
    %7 = vector.load %arg2[%c2, %c0_5, %c0_6] : memref<8x8x128xf32, #tpu.memory_space<vmem>>, vector<1x8x128xf32>
    %8 = vector.shape_cast %7 : vector<1x8x128xf32> to vector<8x128xf32>
    %c3 = arith.constant 3 : index
    %c0_7 = arith.constant 0 : index
    %c0_8 = arith.constant 0 : index
    %9 = vector.load %arg2[%c3, %c0_7, %c0_8] : memref<8x8x128xf32, #tpu.memory_space<vmem>>, vector<1x8x128xf32>
    %10 = vector.shape_cast %9 : vector<1x8x128xf32> to vector<8x128xf32>
    %c4 = arith.constant 4 : index
    %c0_9 = arith.constant 0 : index
    %c0_10 = arith.constant 0 : index
    %11 = vector.load %arg2[%c4, %c0_9, %c0_10] : memref<8x8x128xf32, #tpu.memory_space<vmem>>, vector<1x8x128xf32>
    %12 = vector.shape_cast %11 : vector<1x8x128xf32> to vector<8x128xf32>
    %c5 = arith.constant 5 : index
    %c0_11 = arith.constant 0 : index
    %c0_12 = arith.constant 0 : index
    %13 = vector.load %arg2[%c5, %c0_11, %c0_12] : memref<8x8x128xf32, #tpu.memory_space<vmem>>, vector<1x8x128xf32>
    %14 = vector.shape_cast %13 : vector<1x8x128xf32> to vector<8x128xf32>
    %c6 = arith.constant 6 : index
    %c0_13 = arith.constant 0 : index
    %c0_14 = arith.constant 0 : index
    %15 = vector.load %arg2[%c6, %c0_13, %c0_14] : memref<8x8x128xf32, #tpu.memory_space<vmem>>, vector<1x8x128xf32>
    %16 = vector.shape_cast %15 : vector<1x8x128xf32> to vector<8x128xf32>
    %c7 = arith.constant 7 : index
    %c0_15 = arith.constant 0 : index
    %c0_16 = arith.constant 0 : index
    %17 = vector.load %arg2[%c7, %c0_15, %c0_16] : memref<8x8x128xf32, #tpu.memory_space<vmem>>, vector<1x8x128xf32>
    %18 = vector.shape_cast %17 : vector<1x8x128xf32> to vector<8x128xf32>
    %c0_17 = arith.constant 0 : index
    %c0_18 = arith.constant 0 : index
    %c0_19 = arith.constant 0 : index
    %19 = vector.load %arg3[%c0_17, %c0_18, %c0_19] : memref<4x8x128xf32, #tpu.memory_space<vmem>>, vector<1x8x128xf32>
    %20 = vector.shape_cast %19 : vector<1x8x128xf32> to vector<8x128xf32>
    %c1_20 = arith.constant 1 : index
    %c0_21 = arith.constant 0 : index
    %c0_22 = arith.constant 0 : index
    %21 = vector.load %arg3[%c1_20, %c0_21, %c0_22] : memref<4x8x128xf32, #tpu.memory_space<vmem>>, vector<1x8x128xf32>
    %22 = vector.shape_cast %21 : vector<1x8x128xf32> to vector<8x128xf32>
    %c2_23 = arith.constant 2 : index
    %c0_24 = arith.constant 0 : index
    %c0_25 = arith.constant 0 : index
    %23 = vector.load %arg3[%c2_23, %c0_24, %c0_25] : memref<4x8x128xf32, #tpu.memory_space<vmem>>, vector<1x8x128xf32>
    %24 = vector.shape_cast %23 : vector<1x8x128xf32> to vector<8x128xf32>
    %c3_26 = arith.constant 3 : index
    %c0_27 = arith.constant 0 : index
    %c0_28 = arith.constant 0 : index
    %25 = vector.load %arg3[%c3_26, %c0_27, %c0_28] : memref<4x8x128xf32, #tpu.memory_space<vmem>>, vector<1x8x128xf32>
    %26 = vector.shape_cast %25 : vector<1x8x128xf32> to vector<8x128xf32>
    %cst = arith.constant 1.000000e-01 : f32
    %27 = vector.broadcast %cst : f32 to vector<8x128xf32>
    %28 = arith.mulf %4, %27 : vector<8x128xf32>
    %29 = arith.mulf %28, %24 : vector<8x128xf32>
    %30 = arith.addf %20, %29 : vector<8x128xf32>
    %cst_29 = arith.constant 1.000000e-01 : f32
    %31 = vector.broadcast %cst_29 : f32 to vector<8x128xf32>
    %32 = arith.mulf %6, %31 : vector<8x128xf32>
    %33 = arith.mulf %32, %26 : vector<8x128xf32>
    %34 = arith.addf %22, %33 : vector<8x128xf32>
    %cst_30 = arith.constant 2.000000e-01 : f32
    %35 = vector.broadcast %cst_30 : f32 to vector<8x128xf32>
    %36 = arith.mulf %8, %35 : vector<8x128xf32>
    %37 = math.exp %36 : vector<8x128xf32>
    %38 = arith.mulf %24, %37 : vector<8x128xf32>
    %cst_31 = arith.constant 2.000000e-01 : f32
    %39 = vector.broadcast %cst_31 : f32 to vector<8x128xf32>
    %40 = arith.mulf %10, %39 : vector<8x128xf32>
    %41 = math.exp %40 : vector<8x128xf32>
    %42 = arith.mulf %26, %41 : vector<8x128xf32>
    %cst_32 = arith.constant 5.000000e-01 : f32
    %43 = vector.broadcast %cst_32 : f32 to vector<8x128xf32>
    %44 = arith.mulf %43, %38 : vector<8x128xf32>
    %45 = arith.subf %30, %44 : vector<8x128xf32>
    %cst_33 = arith.constant 5.000000e-01 : f32
    %46 = vector.broadcast %cst_33 : f32 to vector<8x128xf32>
    %47 = arith.mulf %46, %42 : vector<8x128xf32>
    %48 = arith.subf %34, %47 : vector<8x128xf32>
    %49 = arith.addf %45, %38 : vector<8x128xf32>
    %50 = arith.addf %48, %42 : vector<8x128xf32>
    %51 = arith.subf %49, %45 : vector<8x128xf32>
    %52 = arith.subf %50, %48 : vector<8x128xf32>
    %53 = arith.mulf %51, %52 : vector<8x128xf32>
    %54 = arith.subf %16, %12 : vector<8x128xf32>
    %55 = arith.subf %18, %14 : vector<8x128xf32>
    %56 = arith.mulf %54, %55 : vector<8x128xf32>
    %57 = arith.minimumf %49, %16 : vector<8x128xf32>
    %58 = arith.maximumf %45, %12 : vector<8x128xf32>
    %59 = arith.subf %57, %58 : vector<8x128xf32>
    %cst_34 = arith.constant 0.000000e+00 : f32
    %60 = vector.broadcast %cst_34 : f32 to vector<8x128xf32>
    %61 = arith.maximumf %59, %60 : vector<8x128xf32>
    %62 = arith.minimumf %50, %18 : vector<8x128xf32>
    %63 = arith.maximumf %48, %14 : vector<8x128xf32>
    %64 = arith.subf %62, %63 : vector<8x128xf32>
    %cst_35 = arith.constant 0.000000e+00 : f32
    %65 = vector.broadcast %cst_35 : f32 to vector<8x128xf32>
    %66 = arith.maximumf %64, %65 : vector<8x128xf32>
    %67 = arith.maximumf %49, %16 : vector<8x128xf32>
    %68 = arith.minimumf %45, %12 : vector<8x128xf32>
    %69 = arith.subf %67, %68 : vector<8x128xf32>
    %cst_36 = arith.constant 0.000000e+00 : f32
    %70 = vector.broadcast %cst_36 : f32 to vector<8x128xf32>
    %71 = arith.maximumf %69, %70 : vector<8x128xf32>
    %72 = arith.maximumf %50, %18 : vector<8x128xf32>
    %73 = arith.minimumf %48, %14 : vector<8x128xf32>
    %74 = arith.subf %72, %73 : vector<8x128xf32>
    %cst_37 = arith.constant 0.000000e+00 : f32
    %75 = vector.broadcast %cst_37 : f32 to vector<8x128xf32>
    %76 = arith.maximumf %74, %75 : vector<8x128xf32>
    %77 = arith.mulf %61, %66 : vector<8x128xf32>
    %78 = arith.mulf %71, %76 : vector<8x128xf32>
    %79 = arith.addf %53, %56 : vector<8x128xf32>
    %80 = arith.subf %79, %77 : vector<8x128xf32>
    %81 = arith.divf %77, %80 : vector<8x128xf32>
    %82 = arith.subf %78, %80 : vector<8x128xf32>
    %83 = arith.divf %82, %78 : vector<8x128xf32>
    %84 = arith.subf %81, %83 : vector<8x128xf32>
    %cst_38 = arith.constant -1.000000e+00 : f32
    %cst_39 = arith.constant 1.000000e+00 : f32
    %85 = vector.broadcast %cst_38 : f32 to vector<8x128xf32>
    %86 = arith.maximumf %85, %84 : vector<8x128xf32>
    %87 = vector.broadcast %cst_39 : f32 to vector<8x128xf32>
    %88 = arith.minimumf %87, %86 : vector<8x128xf32>
    %cst_40 = arith.constant 1.000000e+00 : f32
    %89 = vector.broadcast %cst_40 : f32 to vector<8x128xf32>
    %90 = arith.subf %89, %88 : vector<8x128xf32>
    %c0_41 = arith.constant 0 : index
    %c0_42 = arith.constant 0 : index
    %91 = vector.load %arg4[%c0_41, %c0_42] : memref<8x128xf32, #tpu.memory_space<vmem>>, vector<8x128xf32>
    %92 = vector.shape_cast %90 : vector<8x128xf32> to vector<1x8x128xf32>
    %cst_43 = arith.constant dense<0.000000e+00> : vector<8x128xf32>
    %93 = vector.multi_reduction <add>, %92, %cst_43 [0] : vector<1x8x128xf32> to vector<8x128xf32>
    %94 = arith.addf %91, %93 : vector<8x128xf32>
    %c0_44 = arith.constant 0 : index
    %c0_45 = arith.constant 0 : index
    %95 = vector.load %arg4[%c0_44, %c0_45] : memref<8x128xf32, #tpu.memory_space<vmem>>, vector<8x128xf32>
    tpu.vector_store %arg4[%c0_44, %c0_45], %94 {strides = array<i32>} : memref<8x128xf32, #tpu.memory_space<vmem>>, vector<8x128xf32>,
    return
  }
  func.func @transform_0(%arg0: i32, %arg1: i32) -> (i32, i32, i32) {
    %c1_i32 = arith.constant 1 : i32
    %0 = arith.muli %arg0, %c1_i32 : i32
    %1 = arith.addi %0, %arg1 : i32
    %c0_i32 = arith.constant 0 : i32
    %c0_i32_0 = arith.constant 0 : i32
    %c0_i32_1 = arith.constant 0 : i32
    return %c0_i32, %1, %c0_i32_0 : i32, i32, i32
  }
  func.func @transform_1(%arg0: i32, %arg1: i32) -> (i32, i32, i32) {
    %c1_i32 = arith.constant 1 : i32
    %0 = arith.muli %arg0, %c1_i32 : i32
    %1 = arith.addi %0, %arg1 : i32
    %c0_i32 = arith.constant 0 : i32
    %c0_i32_0 = arith.constant 0 : i32
    %c0_i32_1 = arith.constant 0 : i32
    return %c0_i32, %1, %c0_i32_0 : i32, i32, i32
  }
  func.func @transform_2(%arg0: i32, %arg1: i32) -> (i32, i32) {
    %c0_i32 = arith.constant 0 : i32
    %c0_i32_0 = arith.constant 0 : i32
    return %arg0, %c0_i32 : i32, i32
  }
}

</mosaic_0001>

<llo_original>
// kernel: tpu_custom_call.1
$region0: #{tpu_custom_call.1}
  #allocation0 [shape = 'u32[]', space=smem, size = 0x4, offset = 0x4, fixed_abs, tag = 'smem constant byte address 0x4 - core index']
  #allocation1 [shape = 'u32[72,128]{1,0:T(1,128)}', space=vmem, size = 0x9000, scoped, tag = 'internal scratch']
  %s0 = inlined_call_operand.hbm [shape: f32[8,8,128], index: 0, kind: input, shape index: {}]
  %s1 = inlined_call_operand.hbm [shape: f32[4,8,128], index: 1, kind: input, shape index: {}]
  %s2 = inlined_call_operand.hbm [shape: f32[8,128], index: 2, kind: output, shape index: {}]
  %s3 = sld [smem:[#allocation0]]
  $region30: #{tpu_custom_call.1} parent=0
    _
  %s5 = ssub.s32 1, %s3
  %s6 = scalar_select 0, %s5, %s3
  $region1: #{tpu_custom_call.1} parent=0
    #allocation2 [shape = 'u8[32768]{0}', space=vmem, size = 0x8000, scoped, tag = 'input window, operand 0, single buffered']
    #allocation3 [shape = 's32[1]{0}', space=sflag, size = 0x4, scoped, tag = 'scoped memory for tpu_custom_call.1']
    #allocation4 [shape = 's32[1]{0}', space=sflag, size = 0x4, scoped, tag = 'scoped memory for tpu_custom_call.1']
    #allocation5 [shape = 'u8[16384]{0}', space=vmem, size = 0x4000, scoped, tag = 'input window, operand 1, single buffered']
    #allocation6 [shape = 's32[1]{0}', space=sflag, size = 0x4, scoped, tag = 'scoped memory for tpu_custom_call.1']
    #allocation7 [shape = 'u8[4096]{0}', space=vmem, size = 0x1000, scoped, tag = 'output window, operand 0, single buffered']
    %7 = vsyncpa [#allocation3], 0
    %8 = vsyncpa [#allocation6], 0
    %9 = vsyncpa [#allocation4], 0
    // Predicated region
    $region2: #{tpu_custom_call.1} parent=1 // pred_check
      _
    $region3: #{tpu_custom_call.1} parent=1 // pred_check_branch
      %11 = sbr.rel (0) target = $region5
    $region4: #{tpu_custom_call.1} parent=1 // pred_region
      %s12 = sadd.s32 0, 0
      %14 = vsyncadd [#allocation3], 0
      %s15 = smul.addr %s12, 8
      %s16 = scalar_lea.hbm %s0, %s15
      %s17 = sshll.u32 %s16, 4
      %s18 = int_to_ptr.hbm [resolvable:$true] %s17
      %s19 = sshll.u32 [#allocation2], 4
      %s20 = int_to_ptr.vmem [resolvable:$true] %s19
      %25 = dma.hbm_to_vmem [thread:$0]  %s18, 1024, %s20, [#allocation3], 128, 128, 8
    $region5: #{tpu_custom_call.1} parent=1 // pred_fallthru
      _
    // Predicated region
    $region6: #{tpu_custom_call.1} parent=1 // pred_check
      _
    $region7: #{tpu_custom_call.1} parent=1 // pred_check_branch
      %27 = sbr.rel (0) target = $region9
    $region8: #{tpu_custom_call.1} parent=1 // pred_region
      %s28 = sadd.s32 0, 0
      %30 = vsyncadd [#allocation6], 0
      %s31 = smul.addr %s28, 8
      %s32 = scalar_lea.hbm %s1, %s31
      %s33 = sshll.u32 %s32, 4
      %s34 = int_to_ptr.hbm [resolvable:$true] %s33
      %s35 = sshll.u32 [#allocation5], 4
      %s36 = int_to_ptr.vmem [resolvable:$true] %s35
      %41 = dma.hbm_to_vmem [thread:$0]  %s34, 512, %s36, [#allocation6], 128, 128, 8
    $region9: #{tpu_custom_call.1} parent=1 // pred_fallthru
      _
    // Predicated region
    $region10: #{tpu_custom_call.1} parent=1 // pred_check
      _
    $region11: #{tpu_custom_call.1} parent=1 // pred_check_branch
      %43 = sbr.rel (0) target = $region13
    $region12: #{tpu_custom_call.1} parent=1 // pred_region
      %45 = dma.done [#allocation3], 1024
    $region13: #{tpu_custom_call.1} parent=1 // pred_fallthru
      _
    // Predicated region
    $region14: #{tpu_custom_call.1} parent=1 // pred_check
      _
    $region15: #{tpu_custom_call.1} parent=1 // pred_check_branch
      %47 = sbr.rel (0) target = $region17
    $region16: #{tpu_custom_call.1} parent=1 // pred_region
      %49 = dma.done [#allocation6], 512
    $region17: #{tpu_custom_call.1} parent=1 // pred_fallthru
      _
    %s50 = sadd.s32 0, 0
    %s51 = sadd.s32 0, 0
    %p52 = scmp.eq.s32.totalorder 0, 0
    // Predicated region
    $region18: #{tpu_custom_call.1} parent=1 // pred_check
      %p53 = pneg %p52
    $region19: #{tpu_custom_call.1} parent=1 // pred_check_branch
      %55 = sbr.rel (%p53) target = $region21
    $region20: #{tpu_custom_call.1} parent=1 // pred_region
      %56 = vst [vmem:[#allocation7] sm:$0xff] 0.0
    $region21: #{tpu_custom_call.1} parent=1 // pred_fallthru
      _
    %v57 = vld [vmem:[#allocation2] sm:$0xff]
    %s58 = scalar_lea.vmem [#allocation2], 8
    %v59 = vld [vmem:[%s58] sm:$0xff]
    %s60 = scalar_lea.vmem [#allocation2], 16
    %v61 = vld [vmem:[%s60] sm:$0xff]
    %s62 = scalar_lea.vmem [#allocation2], 24
    %v63 = vld [vmem:[%s62] sm:$0xff]
    %s64 = scalar_lea.vmem [#allocation2], 32
    %v65 = vld [vmem:[%s64] sm:$0xff]
    %s66 = scalar_lea.vmem [#allocation2], 40
    %v67 = vld [vmem:[%s66] sm:$0xff]
    %s68 = scalar_lea.vmem [#allocation2], 48
    %v69 = vld [vmem:[%s68] sm:$0xff]
    %s70 = scalar_lea.vmem [#allocation2], 56
    %v71 = vld [vmem:[%s70] sm:$0xff]
    %v72 = vld [vmem:[#allocation5] sm:$0xff]
    %s73 = scalar_lea.vmem [#allocation5], 8
    %v74 = vld [vmem:[%s73] sm:$0xff]
    %s75 = scalar_lea.vmem [#allocation5], 16
    %v76 = vld [vmem:[%s75] sm:$0xff]
    %s77 = scalar_lea.vmem [#allocation5], 24
    %v78 = vld [vmem:[%s77] sm:$0xff]
    %v79 = vmul.f32 %v57, 0.1
    %v80 = vmul.f32 %v79, %v76
    %v81 = vadd.f32 %v72, %v80
    %v82 = vmul.f32 %v59, 0.1
    %v83 = vmul.f32 %v82, %v78
    %v84 = vadd.f32 %v74, %v83
    %v85 = vmul.f32 %v61, 0.2
    %v86 = vmul.f32 %v85, 1.442695
    %v87 = vpow.pop %v86
    %v88 = vmul.f32 %v76, %v87
    %v89 = vmul.f32 %v63, 0.2
    %v90 = vmul.f32 %v89, 1.442695
    %v91 = vpow.pop %v90
    %v92 = vmul.f32 %v78, %v91
    %v93 = vmul.f32 %v88, 0.5
    %v94 = vsub.f32 %v81, %v93
    %v95 = vmul.f32 %v92, 0.5
    %v96 = vsub.f32 %v84, %v95
    %v97 = vadd.f32 %v94, %v88
    %v98 = vadd.f32 %v96, %v92
    %v99 = vsub.f32 %v97, %v94
    %v100 = vsub.f32 %v98, %v96
    %v101 = vmul.f32 %v99, %v100
    %v102 = vsub.f32 %v69, %v65
    %v103 = vsub.f32 %v71, %v67
    %v104 = vmul.f32 %v102, %v103
    %v105 = vmin.f32 %v97, %v69
    %v106 = vmax.f32 %v94, %v65
    %v107 = vsub.f32 %v105, %v106
    %v108 = vmax.f32 %v107, 0.0
    %v109 = vmin.f32 %v98, %v71
    %v110 = vmax.f32 %v96, %v67
    %v111 = vsub.f32 %v109, %v110
    %v112 = vmax.f32 %v111, 0.0
    %v113 = vmax.f32 %v97, %v69
    %v114 = vmin.f32 %v94, %v65
    %v115 = vsub.f32 %v113, %v114
    %v116 = vmax.f32 %v115, 0.0
    %v117 = vmax.f32 %v98, %v71
    %v118 = vmin.f32 %v96, %v67
    %v119 = vsub.f32 %v117, %v118
    %v120 = vmax.f32 %v119, 0.0
    %v121 = vmul.f32 %v108, %v112
    %v122 = vmul.f32 %v116, %v120
    %v123 = vadd.f32 %v101, %v104
    %v124 = vsub.f32 %v123, %v121
    %v125 = vrcp.pop %v124
    %v126 = vmul.f32 %v124, %v125
    %v127 = vsub.f32 1.0, %v126
    %v128 = vmul.f32 %v125, %v127
    %v129 = vadd.f32 %v125, %v128
    %vm130 = vweird.f32 %v124
    %vm131 = vweird.f32 %v125
    %vm132 = vmor %vm130, %vm131
    %v133 = vsel %vm132, %v125, %v129
    %v134 = vand.u32 2147483647, %v124
    %vm135 = vcmp.eq.f32.partialorder %v134, 8.507059e+37
    %v136 = vand.u32 %v124, 2147483648
    %v137 = vor.u32 1.1754944e-38, %v136
    %v138 = vsel %vm135, %v137, %v133
    %v139 = vmul.f32 %v121, %v138
    %v140 = vsub.f32 %v122, %v124
    %v141 = vrcp.pop %v122
    %v142 = vmul.f32 %v122, %v141
    %v143 = vsub.f32 1.0, %v142
    %v144 = vmul.f32 %v141, %v143
    %v145 = vadd.f32 %v141, %v144
    %vm146 = vweird.f32 %v122
    %vm147 = vweird.f32 %v141
    %vm148 = vmor %vm146, %vm147
    %v149 = vsel %vm148, %v141, %v145
    %v150 = vand.u32 2147483647, %v122
    %vm151 = vcmp.eq.f32.partialorder %v150, 8.507059e+37
    %v152 = vand.u32 %v122, 2147483648
    %v153 = vor.u32 1.1754944e-38, %v152
    %v154 = vsel %vm151, %v153, %v149
    %v155 = vmul.f32 %v140, %v154
    %v156 = vsub.f32 %v139, %v155
    %v157 = vmax.f32 %v156, -1.0
    %v158 = vmin.f32 %v157, 1.0
    %v159 = vsub.f32 1.0, %v158
    %v160 = vld [vmem:[#allocation7] sm:$0xff]
    %v161 = vadd.f32 %v159, 0.0
    %v162 = vadd.f32 %v160, %v161
    %163 = vst [vmem:[#allocation7] sm:$0xff] %v162
    // Predicated region
    $region22: #{tpu_custom_call.1} parent=1 // pred_check
      _
    $region23: #{tpu_custom_call.1} parent=1 // pred_check_branch
      %165 = sbr.rel (0) target = $region25
    $region24: #{tpu_custom_call.1} parent=1 // pred_region
      %167 = vsyncadd [#allocation4], 0
      %s169 = sshll.u32 [#allocation7], 4
      %s170 = int_to_ptr.vmem [resolvable:$true] %s169
      %s171 = sshll.u32 %s2, 4
      %s172 = int_to_ptr.hbm [resolvable:$true] %s171
      %174 = dma.vmem_to_hbm [thread:$0]  %s170, 128, %s172, [#allocation4]
    $region25: #{tpu_custom_call.1} parent=1 // pred_fallthru
      _
    // Predicated region
    $region26: #{tpu_custom_call.1} parent=1 // pred_check
      _
    $region27: #{tpu_custom_call.1} parent=1 // pred_check_branch
      %176 = sbr.rel (0) target = $region29
    $region28: #{tpu_custom_call.1} parent=1 // pred_region
      %178 = dma.done [#allocation4], 128
    $region29: #{tpu_custom_call.1} parent=1 // pred_fallthru
      _
    %179 = vsyncpa [#allocation3], 1
    %180 = vsyncpa [#allocation6], 1
    %181 = vsyncpa [#allocation4], 1

</llo_original>
